<compile_context>
chip_gen: v7x
topology: tpu7x:2x2x1
jax: 0.10.0
libtpu: 0.0.40
codegen_flags: <defaults>
</compile_context>

<pallas_src>
import functools

import jax
import jax.numpy as jnp
from jax.experimental import pallas as pl
from jax.experimental.pallas import tpu as pltpu


def _round_up(x, m):
    return (x + m - 1) // m * m


def moe_kernel(x_ref, w_ref, expert_ref, mixed_ref, gates_ref, *, n_exps, hidden, ehp):
    """One fused MXU push per row tile.

    w_ref columns: [0        : E*H     )  expert projections (zero-padded to `ehp`)
                   [ehp      : ehp + E )  gate columns
                   [ehp + E  : K       )  zero padding (keeps the RHS lane-dense)
    """
    x = x_ref[...]                                                      # (TM, D)
    fused = jnp.dot(x, w_ref[...], preferred_element_type=jnp.float32)  # (TM, ehp + 128)

    # Lane-dense expert slab -> unmasked 128-wide stores (biggest measured lever).
    expert_ref[...] = fused[:, :ehp]

    # Gating softmax (max-subtracted); divide routed to the EUP via approx reciprocal.
    logits = fused[:, ehp:ehp + n_exps]                                 # (TM, E)
    m = jnp.max(logits, axis=-1, keepdims=True)
    e = jnp.exp(logits - m)
    gates = e * pl.reciprocal(jnp.sum(e, axis=-1, keepdims=True), approx=True)
    gates_ref[...] = gates

    # Gated mixture on the VPU (E is tiny; static unroll over lane slices of the fused result).
    mixed = gates[:, 0:1] * fused[:, 0:hidden]
    for ei in range(1, n_exps):
        mixed = mixed + gates[:, ei:ei + 1] * fused[:, ei * hidden:(ei + 1) * hidden]
    mixed_ref[...] = mixed


def expert_encoder_forward(x, w_gate, w_experts, *, mxu_dtype=jnp.bfloat16):
    """x: (B, C, D), w_gate: (D, E), w_experts: (E, D, H)."""
    B, C, D = x.shape
    E = w_gate.shape[1]
    H = w_experts.shape[2]
    EH = E * H
    EHP = _round_up(EH, 128)          # expert block padded to a lane-dense width
    K = EHP + 128                     # gate block padded to 128 -> fully lane-dense RHS
    N = B * C

    # Row tile: biggest power of two <= 512 that still leaves >= 2 grid steps (v7x: 2 TCs).
    tm = min(512, pl.next_power_of_2(max(1, pl.cdiv(N, 2))))
    min_tm = 16 if jnp.dtype(mxu_dtype).itemsize < 4 else 8   # bf16 sublane packing
    tm = max(tm, min_tm)
    n_pad = pl.cdiv(N, tm) * tm

    xf = x.reshape(N, D).astype(jnp.float32)
    if n_pad != N:                    # ragged B*C: zero-pad rows, slice results afterwards
        xf = jnp.pad(xf, ((0, n_pad - N), (0, 0)))
    xf = xf.astype(mxu_dtype)

    # Fused RHS: [expert weights (D, E*H) | pad | w_gate (D, E) | pad] -> (D, K).
    w_fused = jnp.zeros((D, K), jnp.float32)
    w_fused = w_fused.at[:, :EH].set(
        jnp.transpose(w_experts.astype(jnp.float32), (1, 0, 2)).reshape(D, EH))
    w_fused = w_fused.at[:, EHP:EHP + E].set(w_gate.astype(jnp.float32))
    w_fused = w_fused.astype(mxu_dtype)

    kernel = functools.partial(moe_kernel, n_exps=E, hidden=H, ehp=EHP)

    expert_slab, mixed, gates = pl.pallas_call(
        kernel,
        out_shape=(
            jax.ShapeDtypeStruct((n_pad, EHP), jnp.float32),   # lane-dense expert slab
            jax.ShapeDtypeStruct((n_pad, H), jnp.float32),
            jax.ShapeDtypeStruct((n_pad, E), jnp.float32),
        ),
        grid=(n_pad // tm,),
        in_specs=[
            pl.BlockSpec((tm, D), lambda i: (i, 0)),           # x row tile
            pl.BlockSpec((D, K), lambda i: (0, 0)),            # fused weights (resident)
        ],
        out_specs=(
            pl.BlockSpec((tm, EHP), lambda i: (i, 0)),
            pl.BlockSpec((tm, H), lambda i: (i, 0)),
            pl.BlockSpec((tm, E), lambda i: (i, 0)),
        ),
        compiler_params=pltpu.CompilerParams(
            dimension_semantics=("parallel",),                 # shards grid across TCs (v7x)
            vmem_limit_bytes=32 * 1024 * 1024,                 # explicit; safe on v5e/v6e/v7x
        ),
    )(xf, w_fused)

    mixed = mixed[:N].reshape(B, C, H)
    expert_out = expert_slab[:N, :EH].reshape(B, C, E, H)
    gates = gates[:N].reshape(B, C, E)
    return mixed, expert_out, gates


def reference_forward(x, w_gate, w_experts):
    logits = jnp.einsum("bcd,de->bce", x, w_gate)
    gates = jax.nn.softmax(logits, axis=-1)
    expert_out = jnp.einsum("bcd,edh->bceh", x, w_experts)
    mixed = jnp.sum(gates[..., None] * expert_out, axis=-2)
    return mixed, expert_out, gates


if __name__ == "__main__":
    # Small shapes consistent with the module: layers[0]=D=32 features per city node,
    # batch=2, city_num=16, n_exps=4, expert output width H=32 (gnn_h surrogate).
    B, C, D, E, H = 2, 16, 32, 4, 32

    key = jax.random.PRNGKey(0)
    kx, kg, ke = jax.random.split(key, 3)
    x = jax.random.normal(kx, (B, C, D), dtype=jnp.float32)
    # nn.Parameter(torch.zeros(...)) would give uniform gates; use small random values so the
    # softmax path is actually exercised.
    w_gate = 0.1 * jax.random.normal(kg, (D, E), dtype=jnp.float32)
    w_experts = 0.1 * jax.random.normal(ke, (E, D, H), dtype=jnp.float32)

    r_mixed, r_expert, r_gates = reference_forward(x, w_gate, w_experts)

    # f32 MXU operands: tight numerical check of the kernel math.
    mixed, expert_out, gates = jax.block_until_ready(
        expert_encoder_forward(x, w_gate, w_experts, mxu_dtype=jnp.float32))
    assert mixed.shape == (B, C, H)
    assert expert_out.shape == (B, C, E, H)
    assert gates.shape == (B, C, E)
    assert jnp.allclose(expert_out, r_expert, atol=1e-4, rtol=1e-4)
    assert jnp.allclose(gates, r_gates, atol=5e-3, rtol=5e-3)     # approx reciprocal slack
    assert jnp.allclose(mixed, r_mixed, atol=5e-3, rtol=5e-3)

    # bf16 MXU operands (default fast path on v6e/v7x): looser check vs the f32 reference.
    mixed_bf, expert_bf, gates_bf = jax.block_until_ready(
        expert_encoder_forward(x, w_gate, w_experts, mxu_dtype=jnp.bfloat16))
    assert jnp.allclose(expert_bf, r_expert, atol=3e-2, rtol=3e-2)
    assert jnp.allclose(gates_bf, r_gates, atol=3e-2, rtol=3e-2)
    assert jnp.allclose(mixed_bf, r_mixed, atol=3e-2, rtol=3e-2)

    print("KERNEL_OK")
</pallas_src>

<mosaic_0001>
module attributes {stable_mosaic.version = 11 : i64} {
  func.func @moe_kernel(%arg0: i32, %arg1: memref<16x32xf32, #tpu.memory_space<vmem>>, %arg2: memref<32x256xf32, #tpu.memory_space<vmem>>, %arg3: memref<16x128xf32, #tpu.memory_space<vmem>>, %arg4: memref<16x32xf32, #tpu.memory_space<vmem>>, %arg5: memref<16x4xf32, #tpu.memory_space<vmem>>) attributes {dimension_semantics = [#tpu.dimension_semantics<parallel>], iteration_bounds = array<i64: 2>, scalar_prefetch = 0 : i64, scratch_operands = 0 : i64, tpu.core_type = #tpu.core_type<tc>, window_params = [{transform_indices = @transform_0, window_bounds = array<i64: 16, 32>}, {pipeline_mode = #tpu.pipeline_mode<synchronous>, transform_indices = @transform_1, window_bounds = array<i64: 32, 256>}, {transform_indices = @transform_2, window_bounds = array<i64: 16, 128>}, {transform_indices = @transform_3, window_bounds = array<i64: 16, 32>}, {transform_indices = @transform_4, window_bounds = array<i64: 16, 4>}]} {
    %c0 = arith.constant 0 : index
    %c0_0 = arith.constant 0 : index
    %0 = vector.load %arg1[%c0, %c0_0] : memref<16x32xf32, #tpu.memory_space<vmem>>, vector<16x32xf32>
    %c0_1 = arith.constant 0 : index
    %c0_2 = arith.constant 0 : index
    %1 = vector.load %arg2[%c0_1, %c0_2] : memref<32x256xf32, #tpu.memory_space<vmem>>, vector<32x256xf32>
    %cst = arith.constant dense<0.000000e+00> : vector<16x256xf32>
    %2 = tpu.matmul %0, %1, %cst {dimension_numbers = #tpu.dot_dimension_numbers<[1], [0], [0], [1], [0, 0, 1, 1], [], []>} : vector<16x32xf32>, vector<32x256xf32>, vector<16x256xf32> -> vector<16x256xf32>
    %3 = vector.extract_strided_slice %2 {offsets = [0, 0], sizes = [16, 128], strides = [1, 1]} : vector<16x256xf32> to vector<16x128xf32>
    %c0_3 = arith.constant 0 : index
    %c0_4 = arith.constant 0 : index
    %4 = vector.load %arg3[%c0_3, %c0_4] : memref<16x128xf32, #tpu.memory_space<vmem>>, vector<16x128xf32>
    tpu.vector_store %arg3[%c0_3, %c0_4], %3 {strides = array<i32>} : memref<16x128xf32, #tpu.memory_space<vmem>>, vector<16x128xf32>,
    %5 = vector.extract_strided_slice %2 {offsets = [0, 128], sizes = [16, 4], strides = [1, 1]} : vector<16x256xf32> to vector<16x4xf32>
    %cst_5 = arith.constant dense<0xFF800000> : vector<16xf32>
    %6 = vector.multi_reduction <maximumf>, %5, %cst_5 [1] : vector<16x4xf32> to vector<16xf32>
    %7 = vector.shape_cast %6 : vector<16xf32> to vector<16x1xf32>
    %8 = vector.broadcast %7 : vector<16x1xf32> to vector<16x4xf32>
    %9 = arith.subf %5, %8 : vector<16x4xf32>
    %10 = math.exp %9 : vector<16x4xf32>
    %cst_6 = arith.constant dense<0.000000e+00> : vector<16xf32>
    %11 = vector.multi_reduction <add>, %10, %cst_6 [1] : vector<16x4xf32> to vector<16xf32>
    %12 = vector.shape_cast %11 : vector<16xf32> to vector<16x1xf32>
    %13 = tpu.reciprocal %12 {approx = true} : vector<16x1xf32> -> vector<16x1xf32>
    %14 = vector.broadcast %13 : vector<16x1xf32> to vector<16x4xf32>
    %15 = arith.mulf %10, %14 : vector<16x4xf32>
    %c0_7 = arith.constant 0 : index
    %c0_8 = arith.constant 0 : index
    %16 = vector.load %arg5[%c0_7, %c0_8] : memref<16x4xf32, #tpu.memory_space<vmem>>, vector<16x4xf32>
    tpu.vector_store %arg5[%c0_7, %c0_8], %15 {strides = array<i32>} : memref<16x4xf32, #tpu.memory_space<vmem>>, vector<16x4xf32>,
    %17 = vector.extract_strided_slice %15 {offsets = [0, 0], sizes = [16, 1], strides = [1, 1]} : vector<16x4xf32> to vector<16x1xf32>
    %18 = vector.extract_strided_slice %2 {offsets = [0, 0], sizes = [16, 32], strides = [1, 1]} : vector<16x256xf32> to vector<16x32xf32>
    %19 = vector.broadcast %17 : vector<16x1xf32> to vector<16x32xf32>
    %20 = arith.mulf %19, %18 : vector<16x32xf32>
    %21 = vector.extract_strided_slice %15 {offsets = [0, 1], sizes = [16, 1], strides = [1, 1]} : vector<16x4xf32> to vector<16x1xf32>
    %22 = vector.extract_strided_slice %2 {offsets = [0, 32], sizes = [16, 32], strides = [1, 1]} : vector<16x256xf32> to vector<16x32xf32>
    %23 = vector.broadcast %21 : vector<16x1xf32> to vector<16x32xf32>
    %24 = arith.mulf %23, %22 : vector<16x32xf32>
    %25 = arith.addf %20, %24 : vector<16x32xf32>
    %26 = vector.extract_strided_slice %15 {offsets = [0, 2], sizes = [16, 1], strides = [1, 1]} : vector<16x4xf32> to vector<16x1xf32>
    %27 = vector.extract_strided_slice %2 {offsets = [0, 64], sizes = [16, 32], strides = [1, 1]} : vector<16x256xf32> to vector<16x32xf32>
    %28 = vector.broadcast %26 : vector<16x1xf32> to vector<16x32xf32>
    %29 = arith.mulf %28, %27 : vector<16x32xf32>
    %30 = arith.addf %25, %29 : vector<16x32xf32>
    %31 = vector.extract_strided_slice %15 {offsets = [0, 3], sizes = [16, 1], strides = [1, 1]} : vector<16x4xf32> to vector<16x1xf32>
    %32 = vector.extract_strided_slice %2 {offsets = [0, 96], sizes = [16, 32], strides = [1, 1]} : vector<16x256xf32> to vector<16x32xf32>
    %33 = vector.broadcast %31 : vector<16x1xf32> to vector<16x32xf32>
    %34 = arith.mulf %33, %32 : vector<16x32xf32>
    %35 = arith.addf %30, %34 : vector<16x32xf32>
    %c0_9 = arith.constant 0 : index
    %c0_10 = arith.constant 0 : index
    %36 = vector.load %arg4[%c0_9, %c0_10] : memref<16x32xf32, #tpu.memory_space<vmem>>, vector<16x32xf32>
    tpu.vector_store %arg4[%c0_9, %c0_10], %35 {strides = array<i32>} : memref<16x32xf32, #tpu.memory_space<vmem>>, vector<16x32xf32>,
    return
  }
  func.func @transform_0(%arg0: i32) -> (i32, i32) {
    %c0_i32 = arith.constant 0 : i32
    %c0_i32_0 = arith.constant 0 : i32
    return %arg0, %c0_i32 : i32, i32
  }
  func.func @transform_1(%arg0: i32) -> (i32, i32) {
    %c0_i32 = arith.constant 0 : i32
    %c0_i32_0 = arith.constant 0 : i32
    %c0_i32_1 = arith.constant 0 : i32
    return %c0_i32, %c0_i32_0 : i32, i32
  }
  func.func @transform_2(%arg0: i32) -> (i32, i32) {
    %c0_i32 = arith.constant 0 : i32
    %c0_i32_0 = arith.constant 0 : i32
    return %arg0, %c0_i32 : i32, i32
  }
  func.func @transform_3(%arg0: i32) -> (i32, i32) {
    %c0_i32 = arith.constant 0 : i32
    %c0_i32_0 = arith.constant 0 : i32
    return %arg0, %c0_i32 : i32, i32
  }
  func.func @transform_4(%arg0: i32) -> (i32, i32) {
    %c0_i32 = arith.constant 0 : i32
    %c0_i32_0 = arith.constant 0 : i32
    return %arg0, %c0_i32 : i32, i32
  }
}

</mosaic_0001>

<llo_original>
// kernel: tpu_custom_call.1
$region0: #{tpu_custom_call.1}
  #allocation0 [shape = 'u32[]', space=smem, size = 0x4, offset = 0x4, fixed_abs, tag = 'smem constant byte address 0x4 - core index']
  #allocation1 [shape = 'u32[144,128]{1,0:T(1,128)}', space=vmem, size = 0x12000, scoped, tag = 'internal scratch']
  %s0 = inlined_call_operand.hbm [shape: f32[32,32], index: 0, kind: input, shape index: {}]
  %s1 = inlined_call_operand.hbm [shape: f32[32,256], index: 1, kind: input, shape index: {}]
  %s2 = inlined_call_operand.hbm [shape: f32[32,128], index: 2, kind: output, shape index: {0}]
  %s3 = inlined_call_operand.hbm [shape: f32[32,32], index: 3, kind: output, shape index: {1}]
  %s4 = inlined_call_operand.vmem [shape: f32[32,4], index: 4, kind: output, shape index: {2}]
  %5 = xla_tuple %s2, %s3, %s4
  %s6 = sld [smem:[#allocation0]]
  $region65: #{tpu_custom_call.1} parent=0
    _
  %s8 = ssub.s32 1, %s6
  %s9 = scalar_select 0, %s8, %s6
  $region1: #{tpu_custom_call.1} parent=0
    #allocation2 [shape = 'u8[16384]{0}', space=vmem, size = 0x4000, scoped, tag = 'input window, operand 0']
    #allocation3 [shape = 's32[2]{0}', space=sflag, size = 0x8, scoped, tag = 'scoped memory for tpu_custom_call.1']
    #allocation4 [shape = 's32[2]{0}', space=sflag, size = 0x8, scoped, tag = 'scoped memory for tpu_custom_call.1']
    #allocation5 [shape = 'u8[32768]{0}', space=vmem, size = 0x8000, scoped, tag = 'input window, operand 1, single buffered']
    #allocation6 [shape = 's32[1]{0}', space=sflag, size = 0x4, scoped, tag = 'scoped memory for tpu_custom_call.1']
    #allocation7 [shape = 'u8[16384]{0}', space=vmem, size = 0x4000, scoped, tag = 'output window, operand 0']
    #allocation8 [shape = 'u8[16384]{0}', space=vmem, size = 0x4000, scoped, tag = 'output window, operand 1']
    #allocation9 [shape = 's32[2]{0}', space=sflag, size = 0x8, scoped, tag = 'scoped memory for tpu_custom_call.1']
    %10 = vsyncpa [#allocation3], 0
    %s11 = scalar_lea.sflag [#allocation3], 1
    %12 = vsyncpa %s11, 0
    %13 = vsyncpa [#allocation6], 0
    %14 = vsyncpa [#allocation4], 0
    %s15 = scalar_lea.sflag [#allocation4], 1
    %16 = vsyncpa %s15, 0
    %17 = vsyncpa [#allocation9], 0
    %s18 = scalar_lea.sflag [#allocation9], 1
    %19 = vsyncpa %s18, 0
    loop: start=0, step=1, limit=4
    $region2: #{tpu_custom_call.1} parent=1 // loop_pre_header
      _
    $region3: #{tpu_custom_call.1} parent=1 // loop_header
      %s21 = sphi 0, %s25
      %p22 = scmp.ge.s32.totalorder %s21, 4
      %s31 = sphi 0, %s33
      %s34 = sphi 0, %s31
      %s35 = sphi 0, %s34
      %s51 = sphi 0, %s35
      %s55 = sphi 0, %s55
      %s57 = sphi 0, %s55
      %s58 = sphi 0, %s57
      %s72 = sphi 0, %s58
      %s78 = sphi 0, %s80
      %s81 = sphi 0, %s78
      %s82 = sphi 0, %s81
      %s98 = sphi 0, %s82
      %s104 = sphi 0, %s106
      %s107 = sphi 0, %s104
      %s108 = sphi 0, %s107
      %s124 = sphi 0, %s108
      %s130 = sphi 0, %s132
      %s133 = sphi 0, %s130
      %s134 = sphi 0, %s133
      %s150 = sphi 0, %s134
    $region4: #{tpu_custom_call.1} parent=1 // loop_header_branch
      %24 = sbr.rel (%p22) target = $region8
    $region5: #{tpu_custom_call.1} parent=1 // loop_body
      %s26 = ssub.s32 %s21, 1
      %s27 = ssub.s32 %s21, 2
      %s28 = sadd.s32 %s21, 1
      %s29 = ssub.s32 %s21, %s28
      %p30 = scmp.eq.s32.totalorder %s29, 0
      %s32 = sadd.s32 %s31, 1
      %s33 = scalar_select %p30, %s31, %s32
      %p36 = pneg %p30
      %p37 = scmp.eq.s32.totalorder %s21, 1
      %p38 = por %p36, %p37
      %p39 = scmp.ne.s32.totalorder %s31, %s34
      %p40 = scmp.eq.s32.totalorder %s21, 0
      %p41 = por %p39, %p40
      %p42 = scmp.ne.s32.totalorder %s31, %s34
      %p43 = scmp.eq.s32.totalorder %s26, 1
      %p44 = por %p42, %p43
      %p45 = scmp.ne.s32.totalorder %s34, %s35
      %p46 = scmp.eq.s32.totalorder %s26, 0
      %p47 = por %p45, %p46
      %p48 = scmp.ne.s32.totalorder %s34, %s35
      %p49 = scmp.eq.s32.totalorder %s27, 1
      %p50 = por %p48, %p49
      %p52 = scmp.ne.s32.totalorder %s35, %s51
      %p53 = scmp.eq.s32.totalorder %s27, 0
      %p54 = por %p52, %p53
      %s56 = sadd.s32 %s55, 1
      %p59 = scmp.eq.s32.totalorder %s21, 1
      %p60 = scmp.ne.s32.totalorder %s55, %s57
      %p61 = scmp.eq.s32.totalorder %s21, 0
      %p62 = por %p60, %p61
      %p63 = scmp.ne.s32.totalorder %s55, %s57
      %p64 = scmp.eq.s32.totalorder %s26, 1
      %p65 = por %p63, %p64
      %p66 = scmp.ne.s32.totalorder %s57, %s58
      %p67 = scmp.eq.s32.totalorder %s26, 0
      %p68 = por %p66, %p67
      %p69 = scmp.ne.s32.totalorder %s57, %s58
      %p70 = scmp.eq.s32.totalorder %s27, 1
      %p71 = por %p69, %p70
      %p73 = scmp.ne.s32.totalorder %s58, %s72
      %p74 = scmp.eq.s32.totalorder %s27, 0
      %p75 = por %p73, %p74
      %s76 = ssub.s32 %s21, %s28
      %p77 = scmp.eq.s32.totalorder %s76, 0
      %s79 = sadd.s32 %s78, 1
      %s80 = scalar_select %p77, %s78, %s79
      %p83 = pneg %p77
      %p84 = scmp.eq.s32.totalorder %s21, 1
      %p85 = por %p83, %p84
      %p86 = scmp.ne.s32.totalorder %s78, %s81
      %p87 = scmp.eq.s32.totalorder %s21, 0
      %p88 = por %p86, %p87
      %p89 = scmp.ne.s32.totalorder %s78, %s81
      %p90 = scmp.eq.s32.totalorder %s26, 1
      %p91 = por %p89, %p90
      %p92 = scmp.ne.s32.totalorder %s81, %s82
      %p93 = scmp.eq.s32.totalorder %s26, 0
      %p94 = por %p92, %p93
      %p95 = scmp.ne.s32.totalorder %s81, %s82
      %p96 = scmp.eq.s32.totalorder %s27, 1
      %p97 = por %p95, %p96
      %p99 = scmp.ne.s32.totalorder %s82, %s98
      %p100 = scmp.eq.s32.totalorder %s27, 0
      %p101 = por %p99, %p100
      %s102 = ssub.s32 %s21, %s28
      %p103 = scmp.eq.s32.totalorder %s102, 0
      %s105 = sadd.s32 %s104, 1
      %s106 = scalar_select %p103, %s104, %s105
      %p109 = pneg %p103
      %p110 = scmp.eq.s32.totalorder %s21, 1
      %p111 = por %p109, %p110
      %p112 = scmp.ne.s32.totalorder %s104, %s107
      %p113 = scmp.eq.s32.totalorder %s21, 0
      %p114 = por %p112, %p113
      %p115 = scmp.ne.s32.totalorder %s104, %s107
      %p116 = scmp.eq.s32.totalorder %s26, 1
      %p117 = por %p115, %p116
      %p118 = scmp.ne.s32.totalorder %s107, %s108
      %p119 = scmp.eq.s32.totalorder %s26, 0
      %p120 = por %p118, %p119
      %p121 = scmp.ne.s32.totalorder %s107, %s108
      %p122 = scmp.eq.s32.totalorder %s27, 1
      %p123 = por %p121, %p122
      %p125 = scmp.ne.s32.totalorder %s108, %s124
      %p126 = scmp.eq.s32.totalorder %s27, 0
      %p127 = por %p125, %p126
      %s128 = ssub.s32 %s21, %s28
      %p129 = scmp.eq.s32.totalorder %s128, 0
      %s131 = sadd.s32 %s130, 1
      %s132 = scalar_select %p129, %s130, %s131
      %p135 = pneg %p129
      %p136 = scmp.eq.s32.totalorder %s21, 1
      %p137 = por %p135, %p136
      %p138 = scmp.ne.s32.totalorder %s130, %s133
      %p139 = scmp.eq.s32.totalorder %s21, 0
      %p140 = por %p138, %p139
      %p141 = scmp.ne.s32.totalorder %s130, %s133
      %p142 = scmp.eq.s32.totalorder %s26, 1
      %p143 = por %p141, %p142
      %p144 = scmp.ne.s32.totalorder %s133, %s134
      %p145 = scmp.eq.s32.totalorder %s26, 0
      %p146 = por %p144, %p145
      %p147 = scmp.ne.s32.totalorder %s133, %s134
      %p148 = scmp.eq.s32.totalorder %s27, 1
      %p149 = por %p147, %p148
      %p151 = scmp.ne.s32.totalorder %s134, %s150
      %p152 = scmp.eq.s32.totalorder %s27, 0
      %p153 = por %p151, %p152
      %p154 = scmp.le.s32.totalorder 1, %s21
      %p155 = scmp.lt.s32.totalorder %s21, 3
      %p156 = pnand %p154, %p155
      %p157 = pneg %p156
      // Predicated region
      $region9: #{tpu_custom_call.1} parent=5 // pred_check
        _
      $region10: #{tpu_custom_call.1} parent=5 // pred_check_branch
        %159 = sbr.rel (%p156) target = $region12
      $region11: #{tpu_custom_call.1} parent=5 // pred_region
        %s160 = ssub.s32 %s21, 1
        // Predicated region
        $region13: #{tpu_custom_call.1} parent=11 // pred_check
          %p161 = pneg %p68
        $region14: #{tpu_custom_call.1} parent=11 // pred_check_branch
          %163 = sbr.rel (%p161) target = $region16
        $region15: #{tpu_custom_call.1} parent=11 // pred_region
          %s165 = ssub.s32 1024, 1024
          %166 = vsyncadd [#allocation6], %s165
          %s167 = sshll.u32 [#allocation5], 4
          %s168 = int_to_ptr.vmem [resolvable:$true] %s167
          %173 = dma.hbm_to_vmem [thread:$0]  %s1, 1024, %s168, [#allocation6], 256, 256, 16
        $region16: #{tpu_custom_call.1} parent=11 // pred_fallthru
          _
      $region12: #{tpu_custom_call.1} parent=5 // pred_fallthru
        _
      %p174 = scmp.lt.s32.totalorder %s21, 2
      // Predicated region
      $region17: #{tpu_custom_call.1} parent=5 // pred_check
        %p175 = pneg %p174
      $region18: #{tpu_custom_call.1} parent=5 // pred_check_branch
        %177 = sbr.rel (%p175) target = $region20
      $region19: #{tpu_custom_call.1} parent=5 // pred_region
        // Predicated region
        $region21: #{tpu_custom_call.1} parent=19 // pred_check
          %p178 = pneg %p41
        $region22: #{tpu_custom_call.1} parent=19 // pred_check_branch
          %180 = sbr.rel (%p178) target = $region24
        $region23: #{tpu_custom_call.1} parent=19 // pred_region
          %s181 = sand.u32 %s31, 1
          %s182 = scalar_lea.sflag [#allocation3], %s181
          %s183 = sand.u32 %s31, 1
          %s184 = smul.addr %s183, 16
          %s185 = scalar_lea.vmem [#allocation2], %s184
          %s186 = smul.u32 2, %s21
          %s188 = ssub.s32 256, 256
          %189 = vsyncadd %s182, %s188
          %s190 = smul.addr %s186, 128
          %s191 = scalar_lea.hbm %s0, %s190
          %s192 = sshll.u32 %s185, 4
          %s193 = int_to_ptr.vmem [resolvable:$true] %s192
          %198 = dma.hbm_to_vmem [thread:$0]  %s191, 256, %s193, %s182, 128, 128, 8
        $region24: #{tpu_custom_call.1} parent=19 // pred_fallthru
          _
      $region20: #{tpu_custom_call.1} parent=5 // pred_fallthru
        _
      %p199 = scmp.le.s32.totalorder 1, %s21
      %p200 = scmp.lt.s32.totalorder %s21, 3
      %p201 = pnand %p199, %p200
      %p202 = pneg %p201
      // Predicated region
      $region25: #{tpu_custom_call.1} parent=5 // pred_check
        _
      $region26: #{tpu_custom_call.1} parent=5 // pred_check_branch
        %204 = sbr.rel (%p201) target = $region28
      $region27: #{tpu_custom_call.1} parent=5 // pred_region
        %s205 = ssub.s32 %s21, 1
        %s206 = sand.u32 %s34, 1
        %s207 = scalar_lea.sflag [#allocation3], %s206
        %s208 = sand.u32 %s34, 1
        %s209 = smul.addr %s208, 16
        %s210 = scalar_lea.vmem [#allocation2], %s209
        // Predicated region
        $region29: #{tpu_custom_call.1} parent=27 // pred_check
          %p211 = pneg %p47
        $region30: #{tpu_custom_call.1} parent=27 // pred_check_branch
          %213 = sbr.rel (%p211) target = $region32
        $region31: #{tpu_custom_call.1} parent=27 // pred_region
          %214 = dma.done %s207, 256
        $region32: #{tpu_custom_call.1} parent=27 // pred_fallthru
          _
        // Predicated region
        $region33: #{tpu_custom_call.1} parent=27 // pred_check
          %p215 = pneg %p68
        $region34: #{tpu_custom_call.1} parent=27 // pred_check_branch
          %217 = sbr.rel (%p215) target = $region36
        $region35: #{tpu_custom_call.1} parent=27 // pred_region
          %218 = dma.done [#allocation6], 1024
        $region36: #{tpu_custom_call.1} parent=27 // pred_fallthru
          _
        %s219 = sand.u32 %s34, 1
        %s220 = scalar_lea.sflag [#allocation3], %s219
        %s221 = sand.u32 %s34, 1
        %s222 = smul.addr %s221, 16
        %s223 = scalar_lea.vmem [#allocation2], %s222
        %p224 = pneg %p47
        %p225 = pneg %p44
        %p226 = pneg %p68
        %p227 = pneg %p65
        %p228 = pneg %p94
        %p229 = pneg %p91
        %s230 = sand.u32 %s81, 1
        %s231 = scalar_lea.sflag [#allocation4], %s230
        %s232 = sand.u32 %s81, 1
        %s233 = smul.addr %s232, 16
        %s234 = scalar_lea.vmem [#allocation7], %s233
        %p235 = pneg %p120
        %p236 = pneg %p117
        %s237 = sand.u32 %s107, 1
        %s238 = scalar_lea.sflag [#allocation9], %s237
        %s239 = sand.u32 %s107, 1
        %s240 = smul.addr %s239, 16
        %s241 = scalar_lea.vmem [#allocation8], %s240
        %p242 = pneg %p146
        %p243 = pneg %p143
        %s244 = smul.u32 2, %s26
        %p245 = scmp.lt.s32.totalorder %s244, 3
        %s246 = scalar_select %p245, %s244, 3
        %s247 = smul.addr %s246, 8
        %s248 = scalar_lea.vmem %s4, %s247
        %s249 = smul.u32 2, %s26
        %s250 = smul.u32 2, %s26
        %s251 = smul.u32 2, %s26
        %s252 = smul.u32 2, %s26
        %p253 = scmp.lt.s32.totalorder %s252, 3
        %s254 = scalar_select %p253, %s252, 3
        %s255 = smul.addr %s254, 8
        %s256 = scalar_lea.vmem %s4, %s255
        %s257 = smul.u32 2, %s26
        %v258 = vld [vmem:[%s210] sm:$0xff]
        %v259 = vld [vmem:[%s210 + $0x8] sm:$0xff]
        %v260 = vld [vmem:[#allocation5] sm:$0xff]
        %v261 = vld [vmem:[#allocation5 + $0x8] sm:$0xff]
        %v262 = vld [vmem:[#allocation5 + $0x10] sm:$0xff]
        %v263 = vld [vmem:[#allocation5 + $0x18] sm:$0xff]
        %v264 = vld [vmem:[#allocation5 + $0x20] sm:$0xff]
        %v265 = vld [vmem:[#allocation5 + $0x28] sm:$0xff]
        %v266 = vld [vmem:[#allocation5 + $0x30] sm:$0xff]
        %v267 = vld [vmem:[#allocation5 + $0x38] sm:$0xff]
        %vm268 = vcmask 261120
        %v270 = vsel %vm268, %v258, 0
        %v273 = vsel %vm268, %v259, 0
        %275 = vmatprep.subr.mxu0 %v261
        %276 = vmatpush1.msra.mxu0 %v260
        %277 = vmatprep.subr.mxu0 %v263
        %278 = vmatpush1.msra.mxu0 %v262
        %279 = vmatprep.subr.mxu0 %v265
        %280 = vmatpush1.msra.mxu0 %v264
        %281 = vmatprep.subr.mxu0 %v267
        %282 = vmatpush1.msra.mxu0 %v266
        %283 = vmatprep.subr.mxu0 0.0
        %284 = vmatpush1.msra.mxu0 0.0
        %285 = vmatprep.subr.mxu0 0.0
        %286 = vmatpush1.msra.mxu0 0.0
        %287 = vmatprep.subr.mxu0 0.0
        %288 = vmatpush1.msra.mxu0 0.0
        %289 = vmatprep.subr.mxu0 0.0
        %290 = vmatpush1.msra.mxu0 0.0
        %291 = vmatprep.subr.mxu0 0.0
        %292 = vmatpush1.msra.mxu0 0.0
        %293 = vmatprep.subr.mxu0 0.0
        %294 = vmatpush1.msra.mxu0 0.0
        %295 = vmatprep.subr.mxu0 0.0
        %296 = vmatpush1.msra.mxu0 0.0
        %297 = vmatprep.subr.mxu0 0.0
        %298 = vmatpush1.msra.mxu0 0.0
        %299 = vmatprep.subr.mxu0 0.0
        %300 = vmatpush1.msra.mxu0 0.0
        %301 = vmatprep.subr.mxu0 0.0
        %302 = vmatpush1.msra.mxu0 0.0
        %303 = vmatprep.subr.mxu0 0.0
        %304 = vmatpush1.msra.mxu0 0.0
        %305 = vmatprep.subr.mxu0 0.0
        %306 = vmatpush1.msra.mxu0 0.0
        %307 = vmatprep.subr.mxu0 0.0
        %308 = vmatpush1.msra.mxu0 0.0
        %309 = vmatprep.subr.mxu0 0.0
        %310 = vmatpush1.msra.mxu0 0.0
        %311 = vmatprep.subr.mxu0 0.0
        %312 = vmatpush1.msra.mxu0 0.0
        %313 = vmatprep.subr.mxu0 0.0
        %314 = vmatpush1.msra.mxu0 0.0
        %315 = vmatprep.subr.mxu0 0.0
        %316 = vmatpush1.msra.mxu0 0.0
        %317 = vmatprep.subr.mxu0 0.0
        %318 = vmatpush1.msra.mxu0 0.0
        %319 = vmatprep.subr.mxu0 0.0
        %320 = vmatpush1.msra.mxu0 0.0
        %321 = vmatprep.subr.mxu0 0.0
        %322 = vmatpush1.msra.mxu0 0.0
        %323 = vmatprep.subr.mxu0 0.0
        %324 = vmatpush1.msra.mxu0 0.0
        %325 = vmatprep.subr.mxu0 0.0
        %326 = vmatpush1.msra.mxu0 0.0
        %327 = vmatprep.subr.mxu0 0.0
        %328 = vmatpush1.msra.mxu0 0.0
        %329 = vmatprep.subr.mxu0 0.0
        %330 = vmatpush1.msra.mxu0 0.0
        %331 = vmatprep.subr.mxu0 0.0
        %332 = vmatpush1.msra.mxu0 0.0
        %333 = vmatprep.subr.mxu0 0.0
        %334 = vmatpush1.msra.mxu0 0.0
        %335 = vmatprep.subr.mxu0 0.0
        %336 = vmatpush1.msra.mxu0 0.0
        %337 = vmatprep.subr.mxu0 0.0
        %338 = vmatpush1.msra.mxu0 0.0
        %339 = vmatprep.mubr.f32.mxu0 0.0
        %340 = vmatmul.mubr.f32.gmra.mrb[0].mxu0 %v270
        %v341 = vpop.f32.mrb[0].mxu0
        %v342 = vadd.f32 0.0, %v341
        %v343 = vpop.f32.mrb[0].mxu0
        %v344 = vadd.f32 0.0, %v343
        %345 = vmatprep.mubr.f32.mxu0 0.0
        %346 = vmatmul.mubr.f32.gmra.mrb[0].mxu0 %v273
        %v347 = vpop.f32.mrb[0].mxu0
        %v348 = vadd.f32 0.0, %v347
        %v349 = vpop.f32.mrb[0].mxu0
        %v350 = vadd.f32 0.0, %v349
        %351 = vdwg.mxu0
        %352 = vst [vmem:[%s234] sm:$0xff] %v342
        %353 = vst [vmem:[%s234 + $0x8] sm:$0xff] %v348
        %vm354 = vcmask 31744
        %v355 = vsel %vm354, %v344, -inf
        %356 = vmax.xlane.f32.xlu0 %v355
        %v357 = vpop.xlane.xlu0 %356
        %v358 = vsel %vm354, %v350, -inf
        %359 = vmax.xlane.f32.xlu0 %v358
        %v360 = vpop.xlane.xlu0 %359
        %v361 = vsub.f32 %v344, %v357
        %v362 = vsub.f32 %v350, %v360
        %v363 = vmul.f32 %v361, 1.442695
        %v364 = vpow.pop %v363
        %v365 = vmul.f32 %v362, 1.442695
        %v366 = vpow.pop %v365
        %v367 = vsel %vm354, %v364, 0.0
        %368 = vadd.xlane.f32.xlu0 %v367
        %v369 = vpop.xlane.xlu0 %368
        %v370 = vsel %vm354, %v366, 0.0
        %371 = vadd.xlane.f32.xlu0 %v370
        %v372 = vpop.xlane.xlu0 %371
        %v373 = vrcp.pop %v369
        %v374 = vrcp.pop %v372
        %v375 = vmul.f32 %v364, %v373
        %v376 = vmul.f32 %v366, %v374
        %377 = vst.msk [vmem:[%s256] sm:$0xff] %vm354, %v375
        %378 = vst.msk [vmem:[%s256 + $0x8] sm:$0xff] %vm354, %v376
        %380 = vset.pattern.permute.xlu0 0
        %381 = vperm.xlu0 %380, %v375
        %v382 = vpop.permute.xlu0 %381
        %385 = vset.pattern.permute.xlu0 0
        %386 = vperm.xlu0 %385, %v376
        %v387 = vpop.permute.xlu0 %386
        %v389 = vmul.f32 %v382, %v342
        %v390 = vmul.f32 %v387, %v348
        %391 = vset.pattern.permute.xlu0 1
        %392 = vperm.xlu0 %391, %v375
        %v393 = vpop.permute.xlu0 %392
        %395 = vset.pattern.permute.xlu0 1
        %396 = vperm.xlu0 %395, %v376
        %v397 = vpop.permute.xlu0 %396
        %v399 = vmul.f32 %v393, %v342
        %v400 = vmul.f32 %v397, %v348
        %403 = vrot.lane.b32.xlu0 %v399, 96
        %v404 = vpop.permute.xlu0 %403
        %405 = vrot.lane.b32.xlu0 %v400, 96
        %v406 = vpop.permute.xlu0 %405
        %v409 = vadd.f32 %v389, %v404
        %v410 = vadd.f32 %v390, %v406
        %411 = vset.pattern.permute.xlu0 2
        %412 = vperm.xlu0 %411, %v375
        %v413 = vpop.permute.xlu0 %412
        %415 = vset.pattern.permute.xlu0 2
        %416 = vperm.xlu0 %415, %v376
        %v417 = vpop.permute.xlu0 %416
        %v419 = vmul.f32 %v413, %v342
        %v420 = vmul.f32 %v417, %v348
        %423 = vrot.lane.b32.xlu0 %v419, 64
        %v424 = vpop.permute.xlu0 %423
        %425 = vrot.lane.b32.xlu0 %v420, 64
        %v426 = vpop.permute.xlu0 %425
        %v429 = vadd.f32 %v409, %v424
        %v430 = vadd.f32 %v410, %v426
        %431 = vset.pattern.permute.xlu0 3
        %432 = vperm.xlu0 %431, %v375
        %v433 = vpop.permute.xlu0 %432
        %435 = vset.pattern.permute.xlu0 3
        %436 = vperm.xlu0 %435, %v376
        %v437 = vpop.permute.xlu0 %436
        %v439 = vmul.f32 %v433, %v342
        %v440 = vmul.f32 %v437, %v348
        %443 = vrot.lane.b32.xlu0 %v439, 32
        %v444 = vpop.permute.xlu0 %443
        %445 = vrot.lane.b32.xlu0 %v440, 32
        %v446 = vpop.permute.xlu0 %445
        %v449 = vadd.f32 %v429, %v444
        %v450 = vadd.f32 %v430, %v446
        %451 = vst.msk [vmem:[%s241] sm:$0xff] %vm268, %v449
        %452 = vst.msk [vmem:[%s241 + $0x8] sm:$0xff] %vm268, %v450
        %s453 = sand.u32 %s81, 1
        %s454 = scalar_lea.sflag [#allocation4], %s453
        %s455 = sand.u32 %s81, 1
        %s456 = smul.addr %s455, 16
        %s457 = scalar_lea.vmem [#allocation7], %s456
        %s458 = sand.u32 %s107, 1
        %s459 = scalar_lea.sflag [#allocation9], %s458
        %s460 = sand.u32 %s107, 1
        %s461 = smul.addr %s460, 16
        %s462 = scalar_lea.vmem [#allocation8], %s461
        %s463 = smul.u32 2, %s26
        %p464 = scmp.lt.s32.totalorder %s463, 3
        %s465 = scalar_select %p464, %s463, 3
        %s466 = smul.addr %s465, 8
        %s467 = scalar_lea.vmem %s4, %s466
        // Predicated region
        $region37: #{tpu_custom_call.1} parent=27 // pred_check
          %p468 = pneg %p91
        $region38: #{tpu_custom_call.1} parent=27 // pred_check_branch
          %470 = sbr.rel (%p468) target = $region40
        $region39: #{tpu_custom_call.1} parent=27 // pred_region
          %s471 = smul.u32 2, %s26
          %s473 = ssub.s32 256, 256
          %474 = vsyncadd %s454, %s473
          %s475 = smul.addr %s471, 128
          %s476 = scalar_lea.hbm %s2, %s475
          %s477 = sshll.u32 %s457, 4
          %s478 = int_to_ptr.vmem [resolvable:$true] %s477
          %483 = dma.vmem_to_hbm [thread:$0]  %s478, 256, %s476, %s454, 128, 128, 8
        $region40: #{tpu_custom_call.1} parent=27 // pred_fallthru
          _
        // Predicated region
        $region41: #{tpu_custom_call.1} parent=27 // pred_check
          %p484 = pneg %p117
        $region42: #{tpu_custom_call.1} parent=27 // pred_check_branch
          %486 = sbr.rel (%p484) target = $region44
        $region43: #{tpu_custom_call.1} parent=27 // pred_region
          %s487 = smul.u32 2, %s26
          %s489 = ssub.s32 256, 256
          %490 = vsyncadd %s459, %s489
          %s491 = smul.addr %s487, 128
          %s492 = scalar_lea.hbm %s3, %s491
          %s493 = sshll.u32 %s462, 4
          %s494 = int_to_ptr.vmem [resolvable:$true] %s493
          %499 = dma.vmem_to_hbm [thread:$0]  %s494, 256, %s492, %s459, 128, 128, 8
        $region44: #{tpu_custom_call.1} parent=27 // pred_fallthru
          _
        // Predicated region
        $region45: #{tpu_custom_call.1} parent=27 // pred_check
          %p500 = pneg %p143
        $region46: #{tpu_custom_call.1} parent=27 // pred_check_branch
          %502 = sbr.rel (%p500) target = $region48
        $region47: #{tpu_custom_call.1} parent=27 // pred_region
          %s503 = smul.u32 2, %s26
        $region48: #{tpu_custom_call.1} parent=27 // pred_fallthru
          _
      $region28: #{tpu_custom_call.1} parent=5 // pred_fallthru
        _
      %p504 = scmp.le.s32.totalorder 2, %s21
      // Predicated region
      $region49: #{tpu_custom_call.1} parent=5 // pred_check
        %p505 = pneg %p504
      $region50: #{tpu_custom_call.1} parent=5 // pred_check_branch
        %507 = sbr.rel (%p505) target = $region52
      $region51: #{tpu_custom_call.1} parent=5 // pred_region
        %s508 = ssub.s32 %s21, 2
        // Predicated region
        $region53: #{tpu_custom_call.1} parent=51 // pred_check
          %p509 = pneg %p97
        $region54: #{tpu_custom_call.1} parent=51 // pred_check_branch
          %511 = sbr.rel (%p509) target = $region56
        $region55: #{tpu_custom_call.1} parent=51 // pred_region
          %s512 = sand.u32 %s82, 1
          %s513 = scalar_lea.sflag [#allocation4], %s512
          %s514 = sand.u32 %s82, 1
          %s515 = smul.addr %s514, 16
          %s516 = scalar_lea.vmem [#allocation7], %s515
          %517 = dma.done %s513, 256
        $region56: #{tpu_custom_call.1} parent=51 // pred_fallthru
          _
        // Predicated region
        $region57: #{tpu_custom_call.1} parent=51 // pred_check
          %p518 = pneg %p123
        $region58: #{tpu_custom_call.1} parent=51 // pred_check_branch
          %520 = sbr.rel (%p518) target = $region60
        $region59: #{tpu_custom_call.1} parent=51 // pred_region
          %s521 = sand.u32 %s108, 1
          %s522 = scalar_lea.sflag [#allocation9], %s521
          %s523 = sand.u32 %s108, 1
          %s524 = smul.addr %s523, 16
          %s525 = scalar_lea.vmem [#allocation8], %s524
          %526 = dma.done %s522, 256
        $region60: #{tpu_custom_call.1} parent=51 // pred_fallthru
          _
        // Predicated region
        $region61: #{tpu_custom_call.1} parent=51 // pred_check
          %p527 = pneg %p149
        $region62: #{tpu_custom_call.1} parent=51 // pred_check_branch
          %529 = sbr.rel (%p527) target = $region64
        $region63: #{tpu_custom_call.1} parent=51 // pred_region
          %s530 = smul.u32 2, %s27
          %p531 = scmp.lt.s32.totalorder %s530, 3
          %s532 = scalar_select %p531, %s530, 3
          %s533 = smul.addr %s532, 8
          %s534 = scalar_lea.vmem %s4, %s533
        $region64: #{tpu_custom_call.1} parent=51 // pred_fallthru
          _
      $region52: #{tpu_custom_call.1} parent=5 // pred_fallthru
        _
    $region6: #{tpu_custom_call.1} parent=1 // loop_footer
      %s25 = sadd.s32 1, %s21
    $region7: #{tpu_custom_call.1} parent=1 // loop_footer_branch
      %20 = sbr.rel target = $region3
    $region8: #{tpu_custom_call.1} parent=1 // loop_exit
      _
    %535 = vsyncpa [#allocation3], 1
    %s536 = scalar_lea.sflag [#allocation3], 1
    %537 = vsyncpa %s536, 1
    %538 = vsyncpa [#allocation6], 1
    %539 = vsyncpa [#allocation4], 1
    %s540 = scalar_lea.sflag [#allocation4], 1
    %541 = vsyncpa %s540, 1
    %542 = vsyncpa [#allocation9], 1
    %s543 = scalar_lea.sflag [#allocation9], 1
    %544 = vsyncpa %s543, 1

</llo_original>
